<compile_context>
chip_gen: v5e
topology: v5e:2x2
jax: 0.10.0
libtpu: 0.0.40
codegen_flags: <defaults>
</compile_context>

<pallas_src>
import numpy as np

import jax
import jax.numpy as jnp
from jax import lax
from jax.experimental import pallas as pl
from jax.experimental.pallas import tpu as pltpu


def _make_fft_bin_kernel(subtract_first: bool):
    """pred/targ: (tm, N) tiles; basis: (N, 2) [col 0 = cos, col 1 = sin]; out: (tm, 1)."""

    def kernel(pred_ref, targ_ref, basis_ref, out_ref):
        if subtract_first:
            # f32 path: exact subtract on the VPU, single fp32-precision MXU
            # projection (HIGHEST => no silent bf16 truncation of f32 operands).
            d = pred_ref[...] - targ_ref[...]
            proj = jnp.dot(d, basis_ref[...],
                           preferred_element_type=jnp.float32,
                           precision=lax.Precision.HIGHEST)
        else:
            # bf16 path: project pred and target separately (DFT linearity) so the
            # tiles stream as bf16 with no full-tile upcast; MXU accumulates in f32.
            p = jnp.dot(pred_ref[...], basis_ref[...],
                        preferred_element_type=jnp.float32)
            t = jnp.dot(targ_ref[...], basis_ref[...],
                        preferred_element_type=jnp.float32)
            proj = p - t
        re = proj[:, 0:1]                           # (tm, 1)
        im = proj[:, 1:2]                           # (tm, 1)
        out_ref[...] = re * re + im * im            # per-row |X[bin]|^2

    return kernel


def _vmem_capacity_bytes():
    try:
        return int(pltpu.get_tpu_info().vmem_capacity_bytes)
    except Exception:
        return 64 * 1024 * 1024   # conservative fallback: v7x per-TensorCore VMEM


def fft_loss(pred, target, bin_idx):
    """pred, target: (B, C, N). Returns scalar f32 == mean |rfft(pred-target)[..., bin]|^2."""
    B, C, N = pred.shape
    M = B * C
    assert bin_idx < N // 2 + 1, "bin index out of rfft range"

    # Stream bf16 directly (half the HBM bytes) only when BOTH inputs are bf16;
    # otherwise compute in f32 so a mixed-dtype target is not silently downcast.
    if pred.dtype == jnp.bfloat16 and target.dtype == jnp.bfloat16:
        in_dtype, subtract_first = jnp.bfloat16, False
    else:
        in_dtype, subtract_first = jnp.float32, True
    # TODO(synk): stream float16 inputs directly (upcast in-kernel) instead of a
    # wrapper-side .astype(f32) pass over HBM.
    pred2 = pred.reshape(M, N).astype(in_dtype)
    targ2 = target.reshape(M, N).astype(in_dtype)

    itemsize = jnp.dtype(in_dtype).itemsize
    align = 16 if in_dtype == jnp.bfloat16 else 8

    # ---- adaptive row tile (generation- and N-aware VMEM budget) ------------
    vmem_cap = _vmem_capacity_bytes()
    budget = min(int(vmem_cap * 0.70), 100 * 1024 * 1024)
    # Per tile row: double-buffered pred+target streams + in-kernel f32 temporaries.
    per_row = 2 * 2 * N * itemsize + 2 * N * 4
    tm_budget = max(align, (budget // per_row) // align * align)
    if M <= align:
        tm_eff = M                                  # one full block, no ragged rows
    else:
        tm_eff = int(min(tm_budget, ((M + align - 1) // align) * align, 2048))
        # Prefer >= 2 grid blocks so both v7x TensorCores get work.
        if pl.cdiv(M, tm_eff) < 2:
            half = (M + 1) // 2
            tm_eff = int(max(align, ((half + align - 1) // align) * align))
    num_blocks = pl.cdiv(M, tm_eff)
    # No host-side padding: Pallas pads reads / masks writes of the ragged last
    # row block, so non-divisible M costs no extra HBM traffic.

    # ---- DFT basis for this bin (host float64 phase, exact integer reduction) ----
    k = (np.arange(N, dtype=np.int64) * int(bin_idx)) % N
    theta = 2.0 * np.pi * k.astype(np.float64) / float(N)
    basis_t = jnp.asarray(np.stack([np.cos(theta), np.sin(theta)], axis=1),
                          dtype=in_dtype)                          # (N, 2), resident

    # ---- explicit VMEM limit from the actual tile footprint ------------------
    vmem_need = (2 * 2 * tm_eff * N * itemsize      # double-buffered pred + target
                 + 2 * tm_eff * N * 4               # f32 subtract / matmul-pass temps
                 + 2 * N * 2 * itemsize             # (N, 2) basis buffers
                 + 2 * tm_eff * 4)                  # (tm, 1) output buffers
    vmem_limit = int(min(max(vmem_need + (4 << 20), 16 << 20),
                         int(vmem_cap * 0.85)))

    ssq = pl.pallas_call(
        _make_fft_bin_kernel(subtract_first),
        out_shape=jax.ShapeDtypeStruct((M, 1), jnp.float32),
        grid_spec=pltpu.PrefetchScalarGridSpec(
            num_scalar_prefetch=0,
            grid=(num_blocks,),
            in_specs=[
                pl.BlockSpec((tm_eff, N), lambda i: (i, 0)),    # pred rows (streamed)
                pl.BlockSpec((tm_eff, N), lambda i: (i, 0)),    # target rows (streamed)
                pl.BlockSpec((N, 2), lambda i: (0, 0)),         # cos/sin basis (resident)
            ],
            out_specs=pl.BlockSpec((tm_eff, 1), lambda i: (i, 0)),
        ),
        compiler_params=pltpu.CompilerParams(
            dimension_semantics=("parallel",),      # independent row blocks (megacore)
            vmem_limit_bytes=vmem_limit,
        ),
    )(pred2, targ2, basis_t)

    # Mean over the true B*C rows.
    return jnp.sum(ssq) / jnp.float32(M)


def fft_loss_reference(pred, target, bin_idx):
    fft_pred = jnp.fft.rfft(pred)
    fft_true = jnp.fft.rfft(target)
    diff = fft_pred[:, :, bin_idx] - fft_true[:, :, bin_idx]
    return jnp.mean(jnp.abs(diff) ** 2)


if __name__ == "__main__":
    # Small shapes: B=2, C=4, N=256; bin must satisfy bin < N//2 + 1
    # (the module's default bin=1900 needs N >= 3799, too large for a smoke test).
    B, C, N = 2, 4, 256
    BIN = 37

    key = jax.random.PRNGKey(0)
    k1, k2 = jax.random.split(key)
    pred = jax.random.normal(k1, (B, C, N), dtype=jnp.float32)
    target = jax.random.normal(k2, (B, C, N), dtype=jnp.float32)

    loss = jax.block_until_ready(fft_loss(pred, target, BIN))
    ref = jax.block_until_ready(fft_loss_reference(pred, target, BIN))

    np.testing.assert_allclose(np.asarray(loss), np.asarray(ref), rtol=1e-4, atol=1e-4)
    print("KERNEL_OK")
</pallas_src>

<mosaic_0001>
module attributes {stable_mosaic.version = 11 : i64} {
  func.func @kernel(%arg0: i32, %arg1: memref<8x256xf32, #tpu.memory_space<vmem>>, %arg2: memref<8x256xf32, #tpu.memory_space<vmem>>, %arg3: memref<256x2xf32, #tpu.memory_space<vmem>>, %arg4: memref<8x1xf32, #tpu.memory_space<vmem>>) attributes {dimension_semantics = [#tpu.dimension_semantics<parallel>], iteration_bounds = array<i64: 1>, scalar_prefetch = 0 : i64, scratch_operands = 0 : i64, tpu.core_type = #tpu.core_type<tc>, window_params = [{transform_indices = @transform_0, window_bounds = array<i64: 8, 256>}, {transform_indices = @transform_1, window_bounds = array<i64: 8, 256>}, {pipeline_mode = #tpu.pipeline_mode<synchronous>, transform_indices = @transform_2, window_bounds = array<i64: 256, 2>}, {transform_indices = @transform_3, window_bounds = array<i64: 8, 1>}]} {
    %c0 = arith.constant 0 : index
    %c0_0 = arith.constant 0 : index
    %0 = vector.load %arg1[%c0, %c0_0] : memref<8x256xf32, #tpu.memory_space<vmem>>, vector<8x256xf32>
    %c0_1 = arith.constant 0 : index
    %c0_2 = arith.constant 0 : index
    %1 = vector.load %arg2[%c0_1, %c0_2] : memref<8x256xf32, #tpu.memory_space<vmem>>, vector<8x256xf32>
    %2 = arith.subf %0, %1 : vector<8x256xf32>
    %c0_3 = arith.constant 0 : index
    %c0_4 = arith.constant 0 : index
    %3 = vector.load %arg3[%c0_3, %c0_4] : memref<256x2xf32, #tpu.memory_space<vmem>>, vector<256x2xf32>
    %cst = arith.constant dense<0.000000e+00> : vector<8x2xf32>
    %4 = tpu.matmul %2, %3, %cst {dimension_numbers = #tpu.dot_dimension_numbers<[1], [0], [0], [1], [0, 0, 1, 1], [], []>, precision = #tpu.contract_precision<fp32>} : vector<8x256xf32>, vector<256x2xf32>, vector<8x2xf32> -> vector<8x2xf32>
    %5 = vector.extract_strided_slice %4 {offsets = [0, 0], sizes = [8, 1], strides = [1, 1]} : vector<8x2xf32> to vector<8x1xf32>
    %6 = vector.extract_strided_slice %4 {offsets = [0, 1], sizes = [8, 1], strides = [1, 1]} : vector<8x2xf32> to vector<8x1xf32>
    %7 = arith.mulf %5, %5 : vector<8x1xf32>
    %8 = arith.mulf %6, %6 : vector<8x1xf32>
    %9 = arith.addf %7, %8 : vector<8x1xf32>
    %c0_5 = arith.constant 0 : index
    %c0_6 = arith.constant 0 : index
    %10 = vector.load %arg4[%c0_5, %c0_6] : memref<8x1xf32, #tpu.memory_space<vmem>>, vector<8x1xf32>
    tpu.vector_store %arg4[%c0_5, %c0_6], %9 {strides = array<i32>} : memref<8x1xf32, #tpu.memory_space<vmem>>, vector<8x1xf32>,
    return
  }
  func.func @transform_0(%arg0: i32) -> (i32, i32) {
    %c0_i32 = arith.constant 0 : i32
    %c0_i32_0 = arith.constant 0 : i32
    return %arg0, %c0_i32 : i32, i32
  }
  func.func @transform_1(%arg0: i32) -> (i32, i32) {
    %c0_i32 = arith.constant 0 : i32
    %c0_i32_0 = arith.constant 0 : i32
    return %arg0, %c0_i32 : i32, i32
  }
  func.func @transform_2(%arg0: i32) -> (i32, i32) {
    %c0_i32 = arith.constant 0 : i32
    %c0_i32_0 = arith.constant 0 : i32
    %c0_i32_1 = arith.constant 0 : i32
    return %c0_i32, %c0_i32_0 : i32, i32
  }
  func.func @transform_3(%arg0: i32) -> (i32, i32) {
    %c0_i32 = arith.constant 0 : i32
    %c0_i32_0 = arith.constant 0 : i32
    return %arg0, %c0_i32 : i32, i32
  }
}

</mosaic_0001>

<llo_original>
// kernel: tpu_custom_call.1
$region0: #{tpu_custom_call.1}
  #allocation0 [shape = 'u32[]', space=smem, size = 0x4, offset = 0x4, fixed_abs, tag = 'smem constant byte address 0x4 - core index']
  #allocation1 [shape = 'u32[72,128]{1,0:T(1,128)}', space=vmem, size = 0x9000, scoped, tag = 'internal scratch']
  %s0 = inlined_call_operand.vmem [shape: f32[8,256], index: 0, kind: input, shape index: {}]
  %s1 = inlined_call_operand.vmem [shape: f32[8,256], index: 1, kind: input, shape index: {}]
  %s2 = inlined_call_operand.vmem [shape: f32[256,2], index: 2, kind: input, shape index: {}]
  %s3 = inlined_call_operand.vmem [shape: f32[8,1], index: 3, kind: output, shape index: {}]
  %s4 = sld [smem:[#allocation0]]
  $region22: #{tpu_custom_call.1} parent=0
    _
  %s6 = ssub.s32 1, %s4
  %s7 = scalar_select 0, %s6, %s4
  // Predicated region
  $region2: #{tpu_custom_call.1} parent=0 // pred_check
    _
  $region3: #{tpu_custom_call.1} parent=0 // pred_check_branch
    %9 = sbr.rel (0) target = $region5
  $region4: #{tpu_custom_call.1} parent=0 // pred_region
    _
  $region5: #{tpu_custom_call.1} parent=0 // pred_fallthru
    _
  // Predicated region
  $region6: #{tpu_custom_call.1} parent=0 // pred_check
    _
  $region7: #{tpu_custom_call.1} parent=0 // pred_check_branch
    %11 = sbr.rel (0) target = $region9
  $region8: #{tpu_custom_call.1} parent=0 // pred_region
    _
  $region9: #{tpu_custom_call.1} parent=0 // pred_fallthru
    _
  // Predicated region
  $region10: #{tpu_custom_call.1} parent=0 // pred_check
    _
  $region11: #{tpu_custom_call.1} parent=0 // pred_check_branch
    %13 = sbr.rel (0) target = $region13
  $region12: #{tpu_custom_call.1} parent=0 // pred_region
    _
  $region13: #{tpu_custom_call.1} parent=0 // pred_fallthru
    _
  %v14 = vld [vmem:[%s0] sm:$0xff]
  %v15 = vld [vmem:[%s0 + $0x8] sm:$0xff]
  %v16 = vld [vmem:[%s1] sm:$0xff]
  %v17 = vld [vmem:[%s1 + $0x8] sm:$0xff]
  %v18 = vsub.f32 %v14, %v16
  %v19 = vsub.f32 %v15, %v17
  %v20 = vld [vmem:[%s2] sm:$0xff]
  %v21 = vld [vmem:[%s2 + $0x8] sm:$0xff]
  %v22 = vld [vmem:[%s2 + $0x10] sm:$0xff]
  %v23 = vld [vmem:[%s2 + $0x18] sm:$0xff]
  %v24 = vld [vmem:[%s2 + $0x20] sm:$0xff]
  %v25 = vld [vmem:[%s2 + $0x28] sm:$0xff]
  %v26 = vld [vmem:[%s2 + $0x30] sm:$0xff]
  %v27 = vld [vmem:[%s2 + $0x38] sm:$0xff]
  %v28 = vld [vmem:[%s2 + $0x40] sm:$0xff]
  %v29 = vld [vmem:[%s2 + $0x48] sm:$0xff]
  %v30 = vld [vmem:[%s2 + $0x50] sm:$0xff]
  %v31 = vld [vmem:[%s2 + $0x58] sm:$0xff]
  %v32 = vld [vmem:[%s2 + $0x60] sm:$0xff]
  %v33 = vld [vmem:[%s2 + $0x68] sm:$0xff]
  %v34 = vld [vmem:[%s2 + $0x70] sm:$0xff]
  %v35 = vld [vmem:[%s2 + $0x78] sm:$0xff]
  %v36 = vld [vmem:[%s2 + $0x80] sm:$0xff]
  %v37 = vld [vmem:[%s2 + $0x88] sm:$0xff]
  %v38 = vld [vmem:[%s2 + $0x90] sm:$0xff]
  %v39 = vld [vmem:[%s2 + $0x98] sm:$0xff]
  %v40 = vld [vmem:[%s2 + $0xa0] sm:$0xff]
  %v41 = vld [vmem:[%s2 + $0xa8] sm:$0xff]
  %v42 = vld [vmem:[%s2 + $0xb0] sm:$0xff]
  %v43 = vld [vmem:[%s2 + $0xb8] sm:$0xff]
  %v44 = vld [vmem:[%s2 + $0xc0] sm:$0xff]
  %v45 = vld [vmem:[%s2 + $0xc8] sm:$0xff]
  %v46 = vld [vmem:[%s2 + $0xd0] sm:$0xff]
  %v47 = vld [vmem:[%s2 + $0xd8] sm:$0xff]
  %v48 = vld [vmem:[%s2 + $0xe0] sm:$0xff]
  %v49 = vld [vmem:[%s2 + $0xe8] sm:$0xff]
  %v50 = vld [vmem:[%s2 + $0xf0] sm:$0xff]
  %v51 = vld [vmem:[%s2 + $0xf8] sm:$0xff]
  %v52 = vand.u32 %v35, 4294901760
  %53 = vmatpush.msra.mxu0 %v52
  %v54 = vand.u32 %v34, 4294901760
  %55 = vmatpush.msra.mxu0 %v54
  %v56 = vand.u32 %v33, 4294901760
  %57 = vmatpush.msra.mxu0 %v56
  %v58 = vand.u32 %v32, 4294901760
  %59 = vmatpush.msra.mxu0 %v58
  %v60 = vand.u32 %v31, 4294901760
  %61 = vmatpush.msra.mxu0 %v60
  %v62 = vand.u32 %v30, 4294901760
  %63 = vmatpush.msra.mxu0 %v62
  %v64 = vand.u32 %v29, 4294901760
  %65 = vmatpush.msra.mxu0 %v64
  %v66 = vand.u32 %v28, 4294901760
  %67 = vmatpush.msra.mxu0 %v66
  %v68 = vand.u32 %v27, 4294901760
  %69 = vmatpush.msra.mxu0 %v68
  %v70 = vand.u32 %v26, 4294901760
  %71 = vmatpush.msra.mxu0 %v70
  %v72 = vand.u32 %v25, 4294901760
  %73 = vmatpush.msra.mxu0 %v72
  %v74 = vand.u32 %v24, 4294901760
  %75 = vmatpush.msra.mxu0 %v74
  %v76 = vand.u32 %v23, 4294901760
  %77 = vmatpush.msra.mxu0 %v76
  %v78 = vand.u32 %v22, 4294901760
  %79 = vmatpush.msra.mxu0 %v78
  %v80 = vand.u32 %v21, 4294901760
  %81 = vmatpush.msra.mxu0 %v80
  %v82 = vand.u32 %v20, 4294901760
  %83 = vmatpush.msra.mxu0 %v82
  %v84 = vand.u32 %v18, 4294901760
  %v85 = vsub.f32 %v18, %v84
  %v86 = vand.u32 %v85, 4294901760
  %v87 = vsub.f32 %v85, %v86
  %v88 = vand.u32 %v87, 4294901760
  %89 = vmatmul.f32.gmra.mxu0 %v88
  %v90 = vpop.f32.mrf.mxu0
  %v91 = vadd.f32 0.0, %v90
  %92 = vdwg.mxu0
  %v93 = vand.u32 %v35, 4294901760
  %v94 = vsub.f32 %v35, %v93
  %v95 = vand.u32 %v94, 4294901760
  %v96 = vsub.f32 %v94, %v95
  %v97 = vand.u32 %v96, 4294901760
  %98 = vmatpush.msra.mxu0 %v97
  %v99 = vand.u32 %v34, 4294901760
  %v100 = vsub.f32 %v34, %v99
  %v101 = vand.u32 %v100, 4294901760
  %v102 = vsub.f32 %v100, %v101
  %v103 = vand.u32 %v102, 4294901760
  %104 = vmatpush.msra.mxu0 %v103
  %v105 = vand.u32 %v33, 4294901760
  %v106 = vsub.f32 %v33, %v105
  %v107 = vand.u32 %v106, 4294901760
  %v108 = vsub.f32 %v106, %v107
  %v109 = vand.u32 %v108, 4294901760
  %110 = vmatpush.msra.mxu0 %v109
  %v111 = vand.u32 %v32, 4294901760
  %v112 = vsub.f32 %v32, %v111
  %v113 = vand.u32 %v112, 4294901760
  %v114 = vsub.f32 %v112, %v113
  %v115 = vand.u32 %v114, 4294901760
  %116 = vmatpush.msra.mxu0 %v115
  %v117 = vand.u32 %v31, 4294901760
  %v118 = vsub.f32 %v31, %v117
  %v119 = vand.u32 %v118, 4294901760
  %v120 = vsub.f32 %v118, %v119
  %v121 = vand.u32 %v120, 4294901760
  %122 = vmatpush.msra.mxu0 %v121
  %v123 = vand.u32 %v30, 4294901760
  %v124 = vsub.f32 %v30, %v123
  %v125 = vand.u32 %v124, 4294901760
  %v126 = vsub.f32 %v124, %v125
  %v127 = vand.u32 %v126, 4294901760
  %128 = vmatpush.msra.mxu0 %v127
  %v129 = vand.u32 %v29, 4294901760
  %v130 = vsub.f32 %v29, %v129
  %v131 = vand.u32 %v130, 4294901760
  %v132 = vsub.f32 %v130, %v131
  %v133 = vand.u32 %v132, 4294901760
  %134 = vmatpush.msra.mxu0 %v133
  %v135 = vand.u32 %v28, 4294901760
  %v136 = vsub.f32 %v28, %v135
  %v137 = vand.u32 %v136, 4294901760
  %v138 = vsub.f32 %v136, %v137
  %v139 = vand.u32 %v138, 4294901760
  %140 = vmatpush.msra.mxu0 %v139
  %v141 = vand.u32 %v27, 4294901760
  %v142 = vsub.f32 %v27, %v141
  %v143 = vand.u32 %v142, 4294901760
  %v144 = vsub.f32 %v142, %v143
  %v145 = vand.u32 %v144, 4294901760
  %146 = vmatpush.msra.mxu0 %v145
  %v147 = vand.u32 %v26, 4294901760
  %v148 = vsub.f32 %v26, %v147
  %v149 = vand.u32 %v148, 4294901760
  %v150 = vsub.f32 %v148, %v149
  %v151 = vand.u32 %v150, 4294901760
  %152 = vmatpush.msra.mxu0 %v151
  %v153 = vand.u32 %v25, 4294901760
  %v154 = vsub.f32 %v25, %v153
  %v155 = vand.u32 %v154, 4294901760
  %v156 = vsub.f32 %v154, %v155
  %v157 = vand.u32 %v156, 4294901760
  %158 = vmatpush.msra.mxu0 %v157
  %v159 = vand.u32 %v24, 4294901760
  %v160 = vsub.f32 %v24, %v159
  %v161 = vand.u32 %v160, 4294901760
  %v162 = vsub.f32 %v160, %v161
  %v163 = vand.u32 %v162, 4294901760
  %164 = vmatpush.msra.mxu0 %v163
  %v165 = vand.u32 %v23, 4294901760
  %v166 = vsub.f32 %v23, %v165
  %v167 = vand.u32 %v166, 4294901760
  %v168 = vsub.f32 %v166, %v167
  %v169 = vand.u32 %v168, 4294901760
  %170 = vmatpush.msra.mxu0 %v169
  %v171 = vand.u32 %v22, 4294901760
  %v172 = vsub.f32 %v22, %v171
  %v173 = vand.u32 %v172, 4294901760
  %v174 = vsub.f32 %v172, %v173
  %v175 = vand.u32 %v174, 4294901760
  %176 = vmatpush.msra.mxu0 %v175
  %v177 = vand.u32 %v21, 4294901760
  %v178 = vsub.f32 %v21, %v177
  %v179 = vand.u32 %v178, 4294901760
  %v180 = vsub.f32 %v178, %v179
  %v181 = vand.u32 %v180, 4294901760
  %182 = vmatpush.msra.mxu0 %v181
  %v183 = vand.u32 %v20, 4294901760
  %v184 = vsub.f32 %v20, %v183
  %v185 = vand.u32 %v184, 4294901760
  %v186 = vsub.f32 %v184, %v185
  %v187 = vand.u32 %v186, 4294901760
  %188 = vmatpush.msra.mxu0 %v187
  %v189 = vand.u32 %v18, 4294901760
  %190 = vmatmul.f32.gmra.mxu0 %v189
  %v191 = vpop.f32.mrf.mxu0
  %v192 = vadd.f32 %v91, %v191
  %193 = vdwg.mxu0
  %v194 = vand.u32 %v35, 4294901760
  %v195 = vsub.f32 %v35, %v194
  %196 = vmatpush.msra.mxu0 %v195
  %v197 = vand.u32 %v34, 4294901760
  %v198 = vsub.f32 %v34, %v197
  %199 = vmatpush.msra.mxu0 %v198
  %v200 = vand.u32 %v33, 4294901760
  %v201 = vsub.f32 %v33, %v200
  %202 = vmatpush.msra.mxu0 %v201
  %v203 = vand.u32 %v32, 4294901760
  %v204 = vsub.f32 %v32, %v203
  %205 = vmatpush.msra.mxu0 %v204
  %v206 = vand.u32 %v31, 4294901760
  %v207 = vsub.f32 %v31, %v206
  %208 = vmatpush.msra.mxu0 %v207
  %v209 = vand.u32 %v30, 4294901760
  %v210 = vsub.f32 %v30, %v209
  %211 = vmatpush.msra.mxu0 %v210
  %v212 = vand.u32 %v29, 4294901760
  %v213 = vsub.f32 %v29, %v212
  %214 = vmatpush.msra.mxu0 %v213
  %v215 = vand.u32 %v28, 4294901760
  %v216 = vsub.f32 %v28, %v215
  %217 = vmatpush.msra.mxu0 %v216
  %v218 = vand.u32 %v27, 4294901760
  %v219 = vsub.f32 %v27, %v218
  %220 = vmatpush.msra.mxu0 %v219
  %v221 = vand.u32 %v26, 4294901760
  %v222 = vsub.f32 %v26, %v221
  %223 = vmatpush.msra.mxu0 %v222
  %v224 = vand.u32 %v25, 4294901760
  %v225 = vsub.f32 %v25, %v224
  %226 = vmatpush.msra.mxu0 %v225
  %v227 = vand.u32 %v24, 4294901760
  %v228 = vsub.f32 %v24, %v227
  %229 = vmatpush.msra.mxu0 %v228
  %v230 = vand.u32 %v23, 4294901760
  %v231 = vsub.f32 %v23, %v230
  %232 = vmatpush.msra.mxu0 %v231
  %v233 = vand.u32 %v22, 4294901760
  %v234 = vsub.f32 %v22, %v233
  %235 = vmatpush.msra.mxu0 %v234
  %v236 = vand.u32 %v21, 4294901760
  %v237 = vsub.f32 %v21, %v236
  %238 = vmatpush.msra.mxu0 %v237
  %v239 = vand.u32 %v20, 4294901760
  %v240 = vsub.f32 %v20, %v239
  %241 = vmatpush.msra.mxu0 %v240
  %v242 = vand.u32 %v18, 4294901760
  %v243 = vsub.f32 %v18, %v242
  %244 = vmatmul.f32.gmra.mxu0 %v243
  %v245 = vpop.f32.mrf.mxu0
  %v246 = vadd.f32 %v192, %v245
  %247 = vdwg.mxu0
  %v248 = vand.u32 %v35, 4294901760
  %249 = vmatpush.msra.mxu0 %v248
  %v250 = vand.u32 %v34, 4294901760
  %251 = vmatpush.msra.mxu0 %v250
  %v252 = vand.u32 %v33, 4294901760
  %253 = vmatpush.msra.mxu0 %v252
  %v254 = vand.u32 %v32, 4294901760
  %255 = vmatpush.msra.mxu0 %v254
  %v256 = vand.u32 %v31, 4294901760
  %257 = vmatpush.msra.mxu0 %v256
  %v258 = vand.u32 %v30, 4294901760
  %259 = vmatpush.msra.mxu0 %v258
  %v260 = vand.u32 %v29, 4294901760
  %261 = vmatpush.msra.mxu0 %v260
  %v262 = vand.u32 %v28, 4294901760
  %263 = vmatpush.msra.mxu0 %v262
  %v264 = vand.u32 %v27, 4294901760
  %265 = vmatpush.msra.mxu0 %v264
  %v266 = vand.u32 %v26, 4294901760
  %267 = vmatpush.msra.mxu0 %v266
  %v268 = vand.u32 %v25, 4294901760
  %269 = vmatpush.msra.mxu0 %v268
  %v270 = vand.u32 %v24, 4294901760
  %271 = vmatpush.msra.mxu0 %v270
  %v272 = vand.u32 %v23, 4294901760
  %273 = vmatpush.msra.mxu0 %v272
  %v274 = vand.u32 %v22, 4294901760
  %275 = vmatpush.msra.mxu0 %v274
  %v276 = vand.u32 %v21, 4294901760
  %277 = vmatpush.msra.mxu0 %v276
  %v278 = vand.u32 %v20, 4294901760
  %279 = vmatpush.msra.mxu0 %v278
  %v280 = vand.u32 %v18, 4294901760
  %v281 = vsub.f32 %v18, %v280
  %v282 = vand.u32 %v281, 4294901760
  %283 = vmatmul.f32.gmra.mxu0 %v282
  %v284 = vpop.f32.mrf.mxu0
  %v285 = vadd.f32 %v246, %v284
  %286 = vdwg.mxu0
  %v287 = vand.u32 %v35, 4294901760
  %v288 = vsub.f32 %v35, %v287
  %v289 = vand.u32 %v288, 4294901760
  %290 = vmatpush.msra.mxu0 %v289
  %v291 = vand.u32 %v34, 4294901760
  %v292 = vsub.f32 %v34, %v291
  %v293 = vand.u32 %v292, 4294901760
  %294 = vmatpush.msra.mxu0 %v293
  %v295 = vand.u32 %v33, 4294901760
  %v296 = vsub.f32 %v33, %v295
  %v297 = vand.u32 %v296, 4294901760
  %298 = vmatpush.msra.mxu0 %v297
  %v299 = vand.u32 %v32, 4294901760
  %v300 = vsub.f32 %v32, %v299
  %v301 = vand.u32 %v300, 4294901760
  %302 = vmatpush.msra.mxu0 %v301
  %v303 = vand.u32 %v31, 4294901760
  %v304 = vsub.f32 %v31, %v303
  %v305 = vand.u32 %v304, 4294901760
  %306 = vmatpush.msra.mxu0 %v305
  %v307 = vand.u32 %v30, 4294901760
  %v308 = vsub.f32 %v30, %v307
  %v309 = vand.u32 %v308, 4294901760
  %310 = vmatpush.msra.mxu0 %v309
  %v311 = vand.u32 %v29, 4294901760
  %v312 = vsub.f32 %v29, %v311
  %v313 = vand.u32 %v312, 4294901760
  %314 = vmatpush.msra.mxu0 %v313
  %v315 = vand.u32 %v28, 4294901760
  %v316 = vsub.f32 %v28, %v315
  %v317 = vand.u32 %v316, 4294901760
  %318 = vmatpush.msra.mxu0 %v317
  %v319 = vand.u32 %v27, 4294901760
  %v320 = vsub.f32 %v27, %v319
  %v321 = vand.u32 %v320, 4294901760
  %322 = vmatpush.msra.mxu0 %v321
  %v323 = vand.u32 %v26, 4294901760
  %v324 = vsub.f32 %v26, %v323
  %v325 = vand.u32 %v324, 4294901760
  %326 = vmatpush.msra.mxu0 %v325
  %v327 = vand.u32 %v25, 4294901760
  %v328 = vsub.f32 %v25, %v327
  %v329 = vand.u32 %v328, 4294901760
  %330 = vmatpush.msra.mxu0 %v329
  %v331 = vand.u32 %v24, 4294901760
  %v332 = vsub.f32 %v24, %v331
  %v333 = vand.u32 %v332, 4294901760
  %334 = vmatpush.msra.mxu0 %v333
  %v335 = vand.u32 %v23, 4294901760
  %v336 = vsub.f32 %v23, %v335
  %v337 = vand.u32 %v336, 4294901760
  %338 = vmatpush.msra.mxu0 %v337
  %v339 = vand.u32 %v22, 4294901760
  %v340 = vsub.f32 %v22, %v339
  %v341 = vand.u32 %v340, 4294901760
  %342 = vmatpush.msra.mxu0 %v341
  %v343 = vand.u32 %v21, 4294901760
  %v344 = vsub.f32 %v21, %v343
  %v345 = vand.u32 %v344, 4294901760
  %346 = vmatpush.msra.mxu0 %v345
  %v347 = vand.u32 %v20, 4294901760
  %v348 = vsub.f32 %v20, %v347
  %v349 = vand.u32 %v348, 4294901760
  %350 = vmatpush.msra.mxu0 %v349
  %v351 = vand.u32 %v18, 4294901760
  %352 = vmatmul.f32.gmra.mxu0 %v351
  %v353 = vpop.f32.mrf.mxu0
  %v354 = vadd.f32 %v285, %v353
  %355 = vdwg.mxu0
  %v356 = vand.u32 %v35, 4294901760
  %357 = vmatpush.msra.mxu0 %v356
  %v358 = vand.u32 %v34, 4294901760
  %359 = vmatpush.msra.mxu0 %v358
  %v360 = vand.u32 %v33, 4294901760
  %361 = vmatpush.msra.mxu0 %v360
  %v362 = vand.u32 %v32, 4294901760
  %363 = vmatpush.msra.mxu0 %v362
  %v364 = vand.u32 %v31, 4294901760
  %365 = vmatpush.msra.mxu0 %v364
  %v366 = vand.u32 %v30, 4294901760
  %367 = vmatpush.msra.mxu0 %v366
  %v368 = vand.u32 %v29, 4294901760
  %369 = vmatpush.msra.mxu0 %v368
  %v370 = vand.u32 %v28, 4294901760
  %371 = vmatpush.msra.mxu0 %v370
  %v372 = vand.u32 %v27, 4294901760
  %373 = vmatpush.msra.mxu0 %v372
  %v374 = vand.u32 %v26, 4294901760
  %375 = vmatpush.msra.mxu0 %v374
  %v376 = vand.u32 %v25, 4294901760
  %377 = vmatpush.msra.mxu0 %v376
  %v378 = vand.u32 %v24, 4294901760
  %379 = vmatpush.msra.mxu0 %v378
  %v380 = vand.u32 %v23, 4294901760
  %381 = vmatpush.msra.mxu0 %v380
  %v382 = vand.u32 %v22, 4294901760
  %383 = vmatpush.msra.mxu0 %v382
  %v384 = vand.u32 %v21, 4294901760
  %385 = vmatpush.msra.mxu0 %v384
  %v386 = vand.u32 %v20, 4294901760
  %387 = vmatpush.msra.mxu0 %v386
  %v388 = vand.u32 %v18, 4294901760
  %389 = vmatmul.f32.gmra.mxu0 %v388
  %v390 = vpop.f32.mrf.mxu0
  %v391 = vadd.f32 %v354, %v390
  %392 = vdwg.mxu0
  %v393 = vand.u32 %v51, 4294901760
  %394 = vmatpush.msra.mxu0 %v393
  %v395 = vand.u32 %v50, 4294901760
  %396 = vmatpush.msra.mxu0 %v395
  %v397 = vand.u32 %v49, 4294901760
  %398 = vmatpush.msra.mxu0 %v397
  %v399 = vand.u32 %v48, 4294901760
  %400 = vmatpush.msra.mxu0 %v399
  %v401 = vand.u32 %v47, 4294901760
  %402 = vmatpush.msra.mxu0 %v401
  %v403 = vand.u32 %v46, 4294901760
  %404 = vmatpush.msra.mxu0 %v403
  %v405 = vand.u32 %v45, 4294901760
  %406 = vmatpush.msra.mxu0 %v405
  %v407 = vand.u32 %v44, 4294901760
  %408 = vmatpush.msra.mxu0 %v407
  %v409 = vand.u32 %v43, 4294901760
  %410 = vmatpush.msra.mxu0 %v409
  %v411 = vand.u32 %v42, 4294901760
  %412 = vmatpush.msra.mxu0 %v411
  %v413 = vand.u32 %v41, 4294901760
  %414 = vmatpush.msra.mxu0 %v413
  %v415 = vand.u32 %v40, 4294901760
  %416 = vmatpush.msra.mxu0 %v415
  %v417 = vand.u32 %v39, 4294901760
  %418 = vmatpush.msra.mxu0 %v417
  %v419 = vand.u32 %v38, 4294901760
  %420 = vmatpush.msra.mxu0 %v419
  %v421 = vand.u32 %v37, 4294901760
  %422 = vmatpush.msra.mxu0 %v421
  %v423 = vand.u32 %v36, 4294901760
  %424 = vmatpush.msra.mxu0 %v423
  %v425 = vand.u32 %v19, 4294901760
  %v426 = vsub.f32 %v19, %v425
  %v427 = vand.u32 %v426, 4294901760
  %v428 = vsub.f32 %v426, %v427
  %v429 = vand.u32 %v428, 4294901760
  %430 = vmatmul.f32.gmra.mxu0 %v429
  %v431 = vpop.f32.mrf.mxu0
  %v432 = vadd.f32 %v391, %v431
  %433 = vdwg.mxu0
  %v434 = vand.u32 %v51, 4294901760
  %v435 = vsub.f32 %v51, %v434
  %v436 = vand.u32 %v435, 4294901760
  %v437 = vsub.f32 %v435, %v436
  %v438 = vand.u32 %v437, 4294901760
  %439 = vmatpush.msra.mxu0 %v438
  %v440 = vand.u32 %v50, 4294901760
  %v441 = vsub.f32 %v50, %v440
  %v442 = vand.u32 %v441, 4294901760
  %v443 = vsub.f32 %v441, %v442
  %v444 = vand.u32 %v443, 4294901760
  %445 = vmatpush.msra.mxu0 %v444
  %v446 = vand.u32 %v49, 4294901760
  %v447 = vsub.f32 %v49, %v446
  %v448 = vand.u32 %v447, 4294901760
  %v449 = vsub.f32 %v447, %v448
  %v450 = vand.u32 %v449, 4294901760
  %451 = vmatpush.msra.mxu0 %v450
  %v452 = vand.u32 %v48, 4294901760
  %v453 = vsub.f32 %v48, %v452
  %v454 = vand.u32 %v453, 4294901760
  %v455 = vsub.f32 %v453, %v454
  %v456 = vand.u32 %v455, 4294901760
  %457 = vmatpush.msra.mxu0 %v456
  %v458 = vand.u32 %v47, 4294901760
  %v459 = vsub.f32 %v47, %v458
  %v460 = vand.u32 %v459, 4294901760
  %v461 = vsub.f32 %v459, %v460
  %v462 = vand.u32 %v461, 4294901760
  %463 = vmatpush.msra.mxu0 %v462
  %v464 = vand.u32 %v46, 4294901760
  %v465 = vsub.f32 %v46, %v464
  %v466 = vand.u32 %v465, 4294901760
  %v467 = vsub.f32 %v465, %v466
  %v468 = vand.u32 %v467, 4294901760
  %469 = vmatpush.msra.mxu0 %v468
  %v470 = vand.u32 %v45, 4294901760
  %v471 = vsub.f32 %v45, %v470
  %v472 = vand.u32 %v471, 4294901760
  %v473 = vsub.f32 %v471, %v472
  %v474 = vand.u32 %v473, 4294901760
  %475 = vmatpush.msra.mxu0 %v474
  %v476 = vand.u32 %v44, 4294901760
  %v477 = vsub.f32 %v44, %v476
  %v478 = vand.u32 %v477, 4294901760
  %v479 = vsub.f32 %v477, %v478
  %v480 = vand.u32 %v479, 4294901760
  %481 = vmatpush.msra.mxu0 %v480
  %v482 = vand.u32 %v43, 4294901760
  %v483 = vsub.f32 %v43, %v482
  %v484 = vand.u32 %v483, 4294901760
  %v485 = vsub.f32 %v483, %v484
  %v486 = vand.u32 %v485, 4294901760
  %487 = vmatpush.msra.mxu0 %v486
  %v488 = vand.u32 %v42, 4294901760
  %v489 = vsub.f32 %v42, %v488
  %v490 = vand.u32 %v489, 4294901760
  %v491 = vsub.f32 %v489, %v490
  %v492 = vand.u32 %v491, 4294901760
  %493 = vmatpush.msra.mxu0 %v492
  %v494 = vand.u32 %v41, 4294901760
  %v495 = vsub.f32 %v41, %v494
  %v496 = vand.u32 %v495, 4294901760
  %v497 = vsub.f32 %v495, %v496
  %v498 = vand.u32 %v497, 4294901760
  %499 = vmatpush.msra.mxu0 %v498
  %v500 = vand.u32 %v40, 4294901760
  %v501 = vsub.f32 %v40, %v500
  %v502 = vand.u32 %v501, 4294901760
  %v503 = vsub.f32 %v501, %v502
  %v504 = vand.u32 %v503, 4294901760
  %505 = vmatpush.msra.mxu0 %v504
  %v506 = vand.u32 %v39, 4294901760
  %v507 = vsub.f32 %v39, %v506
  %v508 = vand.u32 %v507, 4294901760
  %v509 = vsub.f32 %v507, %v508
  %v510 = vand.u32 %v509, 4294901760
  %511 = vmatpush.msra.mxu0 %v510
  %v512 = vand.u32 %v38, 4294901760
  %v513 = vsub.f32 %v38, %v512
  %v514 = vand.u32 %v513, 4294901760
  %v515 = vsub.f32 %v513, %v514
  %v516 = vand.u32 %v515, 4294901760
  %517 = vmatpush.msra.mxu0 %v516
  %v518 = vand.u32 %v37, 4294901760
  %v519 = vsub.f32 %v37, %v518
  %v520 = vand.u32 %v519, 4294901760
  %v521 = vsub.f32 %v519, %v520
  %v522 = vand.u32 %v521, 4294901760
  %523 = vmatpush.msra.mxu0 %v522
  %v524 = vand.u32 %v36, 4294901760
  %v525 = vsub.f32 %v36, %v524
  %v526 = vand.u32 %v525, 4294901760
  %v527 = vsub.f32 %v525, %v526
  %v528 = vand.u32 %v527, 4294901760
  %529 = vmatpush.msra.mxu0 %v528
  %v530 = vand.u32 %v19, 4294901760
  %531 = vmatmul.f32.gmra.mxu0 %v530
  %v532 = vpop.f32.mrf.mxu0
  %v533 = vadd.f32 %v432, %v532
  %534 = vdwg.mxu0
  %v535 = vand.u32 %v51, 4294901760
  %v536 = vsub.f32 %v51, %v535
  %537 = vmatpush.msra.mxu0 %v536
  %v538 = vand.u32 %v50, 4294901760
  %v539 = vsub.f32 %v50, %v538
  %540 = vmatpush.msra.mxu0 %v539
  %v541 = vand.u32 %v49, 4294901760
  %v542 = vsub.f32 %v49, %v541
  %543 = vmatpush.msra.mxu0 %v542
  %v544 = vand.u32 %v48, 4294901760
  %v545 = vsub.f32 %v48, %v544
  %546 = vmatpush.msra.mxu0 %v545
  %v547 = vand.u32 %v47, 4294901760
  %v548 = vsub.f32 %v47, %v547
  %549 = vmatpush.msra.mxu0 %v548
  %v550 = vand.u32 %v46, 4294901760
  %v551 = vsub.f32 %v46, %v550
  %552 = vmatpush.msra.mxu0 %v551
  %v553 = vand.u32 %v45, 4294901760
  %v554 = vsub.f32 %v45, %v553
  %555 = vmatpush.msra.mxu0 %v554
  %v556 = vand.u32 %v44, 4294901760
  %v557 = vsub.f32 %v44, %v556
  %558 = vmatpush.msra.mxu0 %v557
  %v559 = vand.u32 %v43, 4294901760
  %v560 = vsub.f32 %v43, %v559
  %561 = vmatpush.msra.mxu0 %v560
  %v562 = vand.u32 %v42, 4294901760
  %v563 = vsub.f32 %v42, %v562
  %564 = vmatpush.msra.mxu0 %v563
  %v565 = vand.u32 %v41, 4294901760
  %v566 = vsub.f32 %v41, %v565
  %567 = vmatpush.msra.mxu0 %v566
  %v568 = vand.u32 %v40, 4294901760
  %v569 = vsub.f32 %v40, %v568
  %570 = vmatpush.msra.mxu0 %v569
  %v571 = vand.u32 %v39, 4294901760
  %v572 = vsub.f32 %v39, %v571
  %573 = vmatpush.msra.mxu0 %v572
  %v574 = vand.u32 %v38, 4294901760
  %v575 = vsub.f32 %v38, %v574
  %576 = vmatpush.msra.mxu0 %v575
  %v577 = vand.u32 %v37, 4294901760
  %v578 = vsub.f32 %v37, %v577
  %579 = vmatpush.msra.mxu0 %v578
  %v580 = vand.u32 %v36, 4294901760
  %v581 = vsub.f32 %v36, %v580
  %582 = vmatpush.msra.mxu0 %v581
  %v583 = vand.u32 %v19, 4294901760
  %v584 = vsub.f32 %v19, %v583
  %585 = vmatmul.f32.gmra.mxu0 %v584
  %v586 = vpop.f32.mrf.mxu0
  %v587 = vadd.f32 %v533, %v586
  %588 = vdwg.mxu0
  %v589 = vand.u32 %v51, 4294901760
  %590 = vmatpush.msra.mxu0 %v589
  %v591 = vand.u32 %v50, 4294901760
  %592 = vmatpush.msra.mxu0 %v591
  %v593 = vand.u32 %v49, 4294901760
  %594 = vmatpush.msra.mxu0 %v593
  %v595 = vand.u32 %v48, 4294901760
  %596 = vmatpush.msra.mxu0 %v595
  %v597 = vand.u32 %v47, 4294901760
  %598 = vmatpush.msra.mxu0 %v597
  %v599 = vand.u32 %v46, 4294901760
  %600 = vmatpush.msra.mxu0 %v599
  %v601 = vand.u32 %v45, 4294901760
  %602 = vmatpush.msra.mxu0 %v601
  %v603 = vand.u32 %v44, 4294901760
  %604 = vmatpush.msra.mxu0 %v603
  %v605 = vand.u32 %v43, 4294901760
  %606 = vmatpush.msra.mxu0 %v605
  %v607 = vand.u32 %v42, 4294901760
  %608 = vmatpush.msra.mxu0 %v607
  %v609 = vand.u32 %v41, 4294901760
  %610 = vmatpush.msra.mxu0 %v609
  %v611 = vand.u32 %v40, 4294901760
  %612 = vmatpush.msra.mxu0 %v611
  %v613 = vand.u32 %v39, 4294901760
  %614 = vmatpush.msra.mxu0 %v613
  %v615 = vand.u32 %v38, 4294901760
  %616 = vmatpush.msra.mxu0 %v615
  %v617 = vand.u32 %v37, 4294901760
  %618 = vmatpush.msra.mxu0 %v617
  %v619 = vand.u32 %v36, 4294901760
  %620 = vmatpush.msra.mxu0 %v619
  %v621 = vand.u32 %v19, 4294901760
  %v622 = vsub.f32 %v19, %v621
  %v623 = vand.u32 %v622, 4294901760
  %624 = vmatmul.f32.gmra.mxu0 %v623
  %v625 = vpop.f32.mrf.mxu0
  %v626 = vadd.f32 %v587, %v625
  %627 = vdwg.mxu0
  %v628 = vand.u32 %v51, 4294901760
  %v629 = vsub.f32 %v51, %v628
  %v630 = vand.u32 %v629, 4294901760
  %631 = vmatpush.msra.mxu0 %v630
  %v632 = vand.u32 %v50, 4294901760
  %v633 = vsub.f32 %v50, %v632
  %v634 = vand.u32 %v633, 4294901760
  %635 = vmatpush.msra.mxu0 %v634
  %v636 = vand.u32 %v49, 4294901760
  %v637 = vsub.f32 %v49, %v636
  %v638 = vand.u32 %v637, 4294901760
  %639 = vmatpush.msra.mxu0 %v638
  %v640 = vand.u32 %v48, 4294901760
  %v641 = vsub.f32 %v48, %v640
  %v642 = vand.u32 %v641, 4294901760
  %643 = vmatpush.msra.mxu0 %v642
  %v644 = vand.u32 %v47, 4294901760
  %v645 = vsub.f32 %v47, %v644
  %v646 = vand.u32 %v645, 4294901760
  %647 = vmatpush.msra.mxu0 %v646
  %v648 = vand.u32 %v46, 4294901760
  %v649 = vsub.f32 %v46, %v648
  %v650 = vand.u32 %v649, 4294901760
  %651 = vmatpush.msra.mxu0 %v650
  %v652 = vand.u32 %v45, 4294901760
  %v653 = vsub.f32 %v45, %v652
  %v654 = vand.u32 %v653, 4294901760
  %655 = vmatpush.msra.mxu0 %v654
  %v656 = vand.u32 %v44, 4294901760
  %v657 = vsub.f32 %v44, %v656
  %v658 = vand.u32 %v657, 4294901760
  %659 = vmatpush.msra.mxu0 %v658
  %v660 = vand.u32 %v43, 4294901760
  %v661 = vsub.f32 %v43, %v660
  %v662 = vand.u32 %v661, 4294901760
  %663 = vmatpush.msra.mxu0 %v662
  %v664 = vand.u32 %v42, 4294901760
  %v665 = vsub.f32 %v42, %v664
  %v666 = vand.u32 %v665, 4294901760
  %667 = vmatpush.msra.mxu0 %v666
  %v668 = vand.u32 %v41, 4294901760
  %v669 = vsub.f32 %v41, %v668
  %v670 = vand.u32 %v669, 4294901760
  %671 = vmatpush.msra.mxu0 %v670
  %v672 = vand.u32 %v40, 4294901760
  %v673 = vsub.f32 %v40, %v672
  %v674 = vand.u32 %v673, 4294901760
  %675 = vmatpush.msra.mxu0 %v674
  %v676 = vand.u32 %v39, 4294901760
  %v677 = vsub.f32 %v39, %v676
  %v678 = vand.u32 %v677, 4294901760
  %679 = vmatpush.msra.mxu0 %v678
  %v680 = vand.u32 %v38, 4294901760
  %v681 = vsub.f32 %v38, %v680
  %v682 = vand.u32 %v681, 4294901760
  %683 = vmatpush.msra.mxu0 %v682
  %v684 = vand.u32 %v37, 4294901760
  %v685 = vsub.f32 %v37, %v684
  %v686 = vand.u32 %v685, 4294901760
  %687 = vmatpush.msra.mxu0 %v686
  %v688 = vand.u32 %v36, 4294901760
  %v689 = vsub.f32 %v36, %v688
  %v690 = vand.u32 %v689, 4294901760
  %691 = vmatpush.msra.mxu0 %v690
  %v692 = vand.u32 %v19, 4294901760
  %693 = vmatmul.f32.gmra.mxu0 %v692
  %v694 = vpop.f32.mrf.mxu0
  %v695 = vadd.f32 %v626, %v694
  %696 = vdwg.mxu0
  %v697 = vand.u32 %v51, 4294901760
  %698 = vmatpush.msra.mxu0 %v697
  %v699 = vand.u32 %v50, 4294901760
  %700 = vmatpush.msra.mxu0 %v699
  %v701 = vand.u32 %v49, 4294901760
  %702 = vmatpush.msra.mxu0 %v701
  %v703 = vand.u32 %v48, 4294901760
  %704 = vmatpush.msra.mxu0 %v703
  %v705 = vand.u32 %v47, 4294901760
  %706 = vmatpush.msra.mxu0 %v705
  %v707 = vand.u32 %v46, 4294901760
  %708 = vmatpush.msra.mxu0 %v707
  %v709 = vand.u32 %v45, 4294901760
  %710 = vmatpush.msra.mxu0 %v709
  %v711 = vand.u32 %v44, 4294901760
  %712 = vmatpush.msra.mxu0 %v711
  %v713 = vand.u32 %v43, 4294901760
  %714 = vmatpush.msra.mxu0 %v713
  %v715 = vand.u32 %v42, 4294901760
  %716 = vmatpush.msra.mxu0 %v715
  %v717 = vand.u32 %v41, 4294901760
  %718 = vmatpush.msra.mxu0 %v717
  %v719 = vand.u32 %v40, 4294901760
  %720 = vmatpush.msra.mxu0 %v719
  %v721 = vand.u32 %v39, 4294901760
  %722 = vmatpush.msra.mxu0 %v721
  %v723 = vand.u32 %v38, 4294901760
  %724 = vmatpush.msra.mxu0 %v723
  %v725 = vand.u32 %v37, 4294901760
  %726 = vmatpush.msra.mxu0 %v725
  %v727 = vand.u32 %v36, 4294901760
  %728 = vmatpush.msra.mxu0 %v727
  %v729 = vand.u32 %v19, 4294901760
  %730 = vmatmul.f32.gmra.mxu0 %v729
  %v731 = vpop.f32.mrf.mxu0
  %v732 = vadd.f32 %v695, %v731
  %733 = vdwg.mxu0
  %v734 = vmul.f32 %v732, %v732
  %736 = vrot.lane.b32.xlu0 %v734, 127
  %v737 = vpop.permute.xlu0 %736
  %v739 = vadd.f32 %v734, %v737
  %vm740 = vcmask 7168
  %741 = vst.msk [vmem:[%s3] sm:$0xff] %vm740, %v739
  // Predicated region
  $region14: #{tpu_custom_call.1} parent=0 // pred_check
    _
  $region15: #{tpu_custom_call.1} parent=0 // pred_check_branch
    %743 = sbr.rel (0) target = $region17
  $region16: #{tpu_custom_call.1} parent=0 // pred_region
    _
  $region17: #{tpu_custom_call.1} parent=0 // pred_fallthru
    _
  // Predicated region
  $region18: #{tpu_custom_call.1} parent=0 // pred_check
    _
  $region19: #{tpu_custom_call.1} parent=0 // pred_check_branch
    %745 = sbr.rel (0) target = $region21
  $region20: #{tpu_custom_call.1} parent=0 // pred_region
    _
  $region21: #{tpu_custom_call.1} parent=0 // pred_fallthru
    _

</llo_original>
